<compile_context>
chip_gen: v7x
topology: tpu7x:2x2x1
jax: 0.10.0
libtpu: 0.0.40
codegen_flags: <defaults>
</compile_context>

<pallas_src>
import jax
import jax.numpy as jnp
from jax.experimental import pallas as pl
from jax.experimental.pallas import tpu as pltpu


def _linkage_link_kernel(ww_ref, prec_ref, prev_link_ref, new_link_ref):
    # ww_ref / prec_ref       : (TBW, 1, M)
    # prev_link_ref / new_link: (TBW, M, M)
    # Compute in f32 (v5e VPU has no bf16 path); cast back at the store.
    ww = ww_ref[:, 0, :].astype(jnp.float32)        # (TBW, M)
    prec = prec_ref[:, 0, :].astype(jnp.float32)    # (TBW, M)
    prev_link = prev_link_ref[...].astype(jnp.float32)

    # Broadcasts computed exactly once per block (no inner loop -> no
    # re-emitted broadcast_in_dim / XLU relayouts).
    ww_i = ww[:, :, None]        # (TBW, M, 1)  <-> write_weights.unsqueeze(3)
    ww_j = ww[:, None, :]        # (TBW, 1, M)  <-> write_weights.unsqueeze(2)
    prec_j = prec[:, None, :]    # (TBW, 1, M)  <-> prev_precedence.unsqueeze(2)

    new_link = (1.0 - ww_i - ww_j) * prev_link + ww_i * prec_j
    new_link_ref[...] = new_link.astype(new_link_ref.dtype)


def _choose_tbw(bw, m, itemsize, vmem_tile_budget=24 << 20):
    """Pick how many (batch*write) slices to process per grid step.

    VMEM cost per slice (double-buffered link in + link out) is ~4*M^2*itemsize;
    budget ~24 MiB so the tiles fit comfortably even on v7x's 64 MiB VMEM,
    while each DMA is multi-MiB (near HBM roofline).  Keep >=2 grid steps so
    the dual-TC chips can shard the parallel axis.
    """
    per_slice = 4 * m * m * itemsize
    cap = max(1, vmem_tile_budget // per_slice)
    if bw >= 2:
        cap = min(cap, max(1, bw // 2))
    return int(min(cap, bw))


def linkage_forward(write_weights, prev_link, prev_precedence_weights):
    """Returns (link, precedence_weights) exactly like Linkage.forward."""
    B, W, M = write_weights.shape
    assert prev_link.shape == (B, W, M, M)
    assert prev_precedence_weights.shape == (B, W, M)
    BW = B * W
    dtype = write_weights.dtype
    itemsize = jnp.dtype(dtype).itemsize

    ww_f = write_weights.reshape(BW, 1, M)
    prec_f = prev_precedence_weights.reshape(BW, 1, M)
    link_f = prev_link.reshape(BW, M, M)

    TBW = _choose_tbw(BW, M, itemsize)
    grid = (pl.cdiv(BW, TBW),)

    # Last two block dims equal the full array dims -> (8,128) constraint
    # satisfied for any M; output last dim is M (lane-dense when M % 128 == 0).
    vec_spec = pl.BlockSpec((TBW, 1, M), lambda i: (i, 0, 0))
    mat_spec = pl.BlockSpec((TBW, M, M), lambda i: (i, 0, 0))

    # Double-buffered (link in + link out + two small vecs) + headroom.
    tile_bytes = TBW * (2 * M * M + 2 * M) * itemsize
    vmem_limit = int(min(max(2 * tile_bytes + (8 << 20), 32 << 20), 56 << 20))

    bytes_accessed = 2 * BW * M * M * itemsize + 2 * BW * M * itemsize
    cost = pl.CostEstimate(flops=4 * BW * M * M, transcendentals=0,
                           bytes_accessed=bytes_accessed)

    new_link = pl.pallas_call(
        _linkage_link_kernel,
        out_shape=jax.ShapeDtypeStruct((BW, M, M), dtype),
        grid_spec=pltpu.PrefetchScalarGridSpec(
            num_scalar_prefetch=0,
            grid=grid,
            in_specs=[vec_spec, vec_spec, mat_spec],
            out_specs=mat_spec,
        ),
        compiler_params=pltpu.CompilerParams(
            dimension_semantics=("parallel",),
            vmem_limit_bytes=vmem_limit,
        ),
        cost_estimate=cost,
    )(ww_f, prec_f, link_f)

    # Precedence update: O(BW*M), trivially fused by XLA outside the kernel.
    write_sum = jnp.sum(write_weights, axis=2, keepdims=True)
    precedence = (1.0 - write_sum) * prev_precedence_weights + write_weights

    return new_link.reshape(B, W, M, M), precedence


def _reference(write_weights, prev_link, prev_prec):
    # Pure-JAX reference mirroring the PyTorch module (for validation).
    ww_i = write_weights[..., :, None]
    ww_j = write_weights[..., None, :]
    prec_j = prev_prec[..., None, :]
    link = (1.0 - ww_i - ww_j) * prev_link + ww_i * prec_j
    write_sum = jnp.sum(write_weights, axis=2, keepdims=True)
    prec = (1.0 - write_sum) * prev_prec + write_weights
    return link, prec


def _run_case(key, batch, num_writes, memory_size):
    k1, k2, k3 = jax.random.split(key, 3)
    write_weights = jax.nn.softmax(
        jax.random.normal(k1, (batch, num_writes, memory_size),
                          dtype=jnp.float32), axis=-1)
    prev_precedence = jax.nn.softmax(
        jax.random.normal(k2, (batch, num_writes, memory_size),
                          dtype=jnp.float32), axis=-1)
    prev_link = jax.random.uniform(
        k3, (batch, num_writes, memory_size, memory_size),
        dtype=jnp.float32) * 0.01

    link, prec = linkage_forward(write_weights, prev_link, prev_precedence)
    jax.block_until_ready((link, prec))

    ref_link, ref_prec = _reference(write_weights, prev_link, prev_precedence)
    assert link.shape == (batch, num_writes, memory_size, memory_size)
    assert prec.shape == (batch, num_writes, memory_size)
    assert jnp.allclose(link, ref_link, atol=1e-5, rtol=1e-5)
    assert jnp.allclose(prec, ref_prec, atol=1e-5, rtol=1e-5)


if __name__ == "__main__":
    key = jax.random.PRNGKey(0)
    k_a, k_b = jax.random.split(key)

    # Matches the module's default usage (num_writes=1).
    _run_case(k_a, batch=2, num_writes=1, memory_size=128)
    # Exercises the TBW>1 blocked path (BW=16 -> TBW=8, grid=2).
    _run_case(k_b, batch=8, num_writes=2, memory_size=128)

    print("KERNEL_OK")
</pallas_src>

<mosaic_0001>
module attributes {stable_mosaic.version = 11 : i64} {
  func.func @_linkage_link_kernel(%arg0: i32, %arg1: memref<1x1x128xf32, #tpu.memory_space<vmem>>, %arg2: memref<1x1x128xf32, #tpu.memory_space<vmem>>, %arg3: memref<1x128x128xf32, #tpu.memory_space<vmem>>, %arg4: memref<1x128x128xf32, #tpu.memory_space<vmem>>) attributes {dimension_semantics = [#tpu.dimension_semantics<parallel>], iteration_bounds = array<i64: 2>, scalar_prefetch = 0 : i64, scratch_operands = 0 : i64, tpu.core_type = #tpu.core_type<tc>, window_params = [{transform_indices = @transform_0, window_bounds = array<i64: 1, 1, 128>}, {transform_indices = @transform_1, window_bounds = array<i64: 1, 1, 128>}, {transform_indices = @transform_2, window_bounds = array<i64: 1, 128, 128>}, {transform_indices = @transform_3, window_bounds = array<i64: 1, 128, 128>}]} {
    %c0 = arith.constant 0 : index
    %c0_0 = arith.constant 0 : index
    %c0_1 = arith.constant 0 : index
    %0 = vector.load %arg1[%c0, %c0_0, %c0_1] : memref<1x1x128xf32, #tpu.memory_space<vmem>>, vector<1x1x128xf32>
    %1 = vector.shape_cast %0 : vector<1x1x128xf32> to vector<1x128xf32>
    %c0_2 = arith.constant 0 : index
    %c0_3 = arith.constant 0 : index
    %c0_4 = arith.constant 0 : index
    %2 = vector.load %arg2[%c0_2, %c0_3, %c0_4] : memref<1x1x128xf32, #tpu.memory_space<vmem>>, vector<1x1x128xf32>
    %3 = vector.shape_cast %2 : vector<1x1x128xf32> to vector<1x128xf32>
    %c0_5 = arith.constant 0 : index
    %c0_6 = arith.constant 0 : index
    %c0_7 = arith.constant 0 : index
    %4 = vector.load %arg3[%c0_5, %c0_6, %c0_7] : memref<1x128x128xf32, #tpu.memory_space<vmem>>, vector<1x128x128xf32>
    %5 = vector.shape_cast %1 : vector<1x128xf32> to vector<1x128x1xf32>
    %6 = vector.shape_cast %1 : vector<1x128xf32> to vector<1x1x128xf32>
    %7 = vector.shape_cast %3 : vector<1x128xf32> to vector<1x1x128xf32>
    %cst = arith.constant 1.000000e+00 : f32
    %8 = vector.broadcast %cst : f32 to vector<1x128x1xf32>
    %9 = arith.subf %8, %5 : vector<1x128x1xf32>
    %10 = vector.broadcast %9 : vector<1x128x1xf32> to vector<1x128x128xf32>
    %11 = vector.broadcast %6 : vector<1x1x128xf32> to vector<1x128x128xf32>
    %12 = arith.subf %10, %11 : vector<1x128x128xf32>
    %13 = arith.mulf %12, %4 : vector<1x128x128xf32>
    %14 = vector.broadcast %5 : vector<1x128x1xf32> to vector<1x128x128xf32>
    %15 = vector.broadcast %7 : vector<1x1x128xf32> to vector<1x128x128xf32>
    %16 = arith.mulf %14, %15 : vector<1x128x128xf32>
    %17 = arith.addf %13, %16 : vector<1x128x128xf32>
    %c0_8 = arith.constant 0 : index
    %c0_9 = arith.constant 0 : index
    %c0_10 = arith.constant 0 : index
    %18 = vector.load %arg4[%c0_8, %c0_9, %c0_10] : memref<1x128x128xf32, #tpu.memory_space<vmem>>, vector<1x128x128xf32>
    tpu.vector_store %arg4[%c0_8, %c0_9, %c0_10], %17 {strides = array<i32>} : memref<1x128x128xf32, #tpu.memory_space<vmem>>, vector<1x128x128xf32>,
    return
  }
  func.func @transform_0(%arg0: i32) -> (i32, i32, i32) {
    %c0_i32 = arith.constant 0 : i32
    %c0_i32_0 = arith.constant 0 : i32
    %c0_i32_1 = arith.constant 0 : i32
    return %arg0, %c0_i32, %c0_i32_0 : i32, i32, i32
  }
  func.func @transform_1(%arg0: i32) -> (i32, i32, i32) {
    %c0_i32 = arith.constant 0 : i32
    %c0_i32_0 = arith.constant 0 : i32
    %c0_i32_1 = arith.constant 0 : i32
    return %arg0, %c0_i32, %c0_i32_0 : i32, i32, i32
  }
  func.func @transform_2(%arg0: i32) -> (i32, i32, i32) {
    %c0_i32 = arith.constant 0 : i32
    %c0_i32_0 = arith.constant 0 : i32
    %c0_i32_1 = arith.constant 0 : i32
    return %arg0, %c0_i32, %c0_i32_0 : i32, i32, i32
  }
  func.func @transform_3(%arg0: i32) -> (i32, i32, i32) {
    %c0_i32 = arith.constant 0 : i32
    %c0_i32_0 = arith.constant 0 : i32
    %c0_i32_1 = arith.constant 0 : i32
    return %arg0, %c0_i32, %c0_i32_0 : i32, i32, i32
  }
}

</mosaic_0001>

<llo_original>
// kernel: tpu_custom_call.1
$region0: #{tpu_custom_call.1}
  #allocation0 [shape = 'u32[]', space=smem, size = 0x4, offset = 0x4, fixed_abs, tag = 'smem constant byte address 0x4 - core index']
  #allocation1 [shape = 'u32[144,128]{1,0:T(1,128)}', space=vmem, size = 0x12000, scoped, tag = 'internal scratch']
  %s0 = inlined_call_operand.hbm [shape: f32[2,1,128], index: 0, kind: input, shape index: {}]
  %s1 = inlined_call_operand.vmem [shape: f32[2,1,128], index: 1, kind: input, shape index: {}]
  %s2 = inlined_call_operand.hbm [shape: f32[2,128,128], index: 2, kind: input, shape index: {}]
  %s3 = inlined_call_operand.hbm [shape: f32[2,128,128], index: 3, kind: output, shape index: {}]
  %s4 = sld [smem:[#allocation0]]
  $region53: #{tpu_custom_call.1} parent=0
    _
  %s6 = ssub.s32 1, %s4
  %s7 = scalar_select 0, %s6, %s4
  $region1: #{tpu_custom_call.1} parent=0
    #allocation2 [shape = 'u8[1024]{0}', space=vmem, size = 0x400, scoped, tag = 'input window, operand 0']
    #allocation3 [shape = 's32[2]{0}', space=sflag, size = 0x8, scoped, tag = 'scoped memory for tpu_custom_call.1']
    #allocation4 [shape = 's32[2]{0}', space=sflag, size = 0x8, scoped, tag = 'scoped memory for tpu_custom_call.1']
    #allocation5 [shape = 'u8[131072]{0}', space=vmem, size = 0x20000, scoped, tag = 'input window, operand 2']
    #allocation6 [shape = 's32[2]{0}', space=sflag, size = 0x8, scoped, tag = 'scoped memory for tpu_custom_call.1']
    #allocation7 [shape = 'u8[131072]{0}', space=vmem, size = 0x20000, scoped, tag = 'output window, operand 0']
    %8 = vsyncpa [#allocation3], 0
    %s9 = scalar_lea.sflag [#allocation3], 1
    %10 = vsyncpa %s9, 0
    %11 = vsyncpa [#allocation6], 0
    %s12 = scalar_lea.sflag [#allocation6], 1
    %13 = vsyncpa %s12, 0
    %14 = vsyncpa [#allocation4], 0
    %s15 = scalar_lea.sflag [#allocation4], 1
    %16 = vsyncpa %s15, 0
    loop: start=0, step=1, limit=4
    $region2: #{tpu_custom_call.1} parent=1 // loop_pre_header
      _
    $region3: #{tpu_custom_call.1} parent=1 // loop_header
      %s18 = sphi 0, %s22
      %p19 = scmp.ge.s32.totalorder %s18, 4
      %s28 = sphi 0, %s30
      %s31 = sphi 0, %s28
      %s32 = sphi 0, %s31
      %s48 = sphi 0, %s32
      %s54 = sphi 0, %s56
      %s57 = sphi 0, %s54
      %s58 = sphi 0, %s57
      %s74 = sphi 0, %s58
      %s80 = sphi 0, %s82
      %s83 = sphi 0, %s80
      %s84 = sphi 0, %s83
      %s100 = sphi 0, %s84
      %s106 = sphi 0, %s108
      %s109 = sphi 0, %s106
      %s110 = sphi 0, %s109
      %s126 = sphi 0, %s110
    $region4: #{tpu_custom_call.1} parent=1 // loop_header_branch
      %21 = sbr.rel (%p19) target = $region8
    $region5: #{tpu_custom_call.1} parent=1 // loop_body
      %s23 = ssub.s32 %s18, 1
      %s24 = ssub.s32 %s18, 2
      %s25 = sadd.s32 %s18, 1
      %s26 = ssub.s32 %s18, %s25
      %p27 = scmp.eq.s32.totalorder %s26, 0
      %s29 = sadd.s32 %s28, 1
      %s30 = scalar_select %p27, %s28, %s29
      %p33 = pneg %p27
      %p34 = scmp.eq.s32.totalorder %s18, 1
      %p35 = por %p33, %p34
      %p36 = scmp.ne.s32.totalorder %s28, %s31
      %p37 = scmp.eq.s32.totalorder %s18, 0
      %p38 = por %p36, %p37
      %p39 = scmp.ne.s32.totalorder %s28, %s31
      %p40 = scmp.eq.s32.totalorder %s23, 1
      %p41 = por %p39, %p40
      %p42 = scmp.ne.s32.totalorder %s31, %s32
      %p43 = scmp.eq.s32.totalorder %s23, 0
      %p44 = por %p42, %p43
      %p45 = scmp.ne.s32.totalorder %s31, %s32
      %p46 = scmp.eq.s32.totalorder %s24, 1
      %p47 = por %p45, %p46
      %p49 = scmp.ne.s32.totalorder %s32, %s48
      %p50 = scmp.eq.s32.totalorder %s24, 0
      %p51 = por %p49, %p50
      %s52 = ssub.s32 %s18, %s25
      %p53 = scmp.eq.s32.totalorder %s52, 0
      %s55 = sadd.s32 %s54, 1
      %s56 = scalar_select %p53, %s54, %s55
      %p59 = pneg %p53
      %p60 = scmp.eq.s32.totalorder %s18, 1
      %p61 = por %p59, %p60
      %p62 = scmp.ne.s32.totalorder %s54, %s57
      %p63 = scmp.eq.s32.totalorder %s18, 0
      %p64 = por %p62, %p63
      %p65 = scmp.ne.s32.totalorder %s54, %s57
      %p66 = scmp.eq.s32.totalorder %s23, 1
      %p67 = por %p65, %p66
      %p68 = scmp.ne.s32.totalorder %s57, %s58
      %p69 = scmp.eq.s32.totalorder %s23, 0
      %p70 = por %p68, %p69
      %p71 = scmp.ne.s32.totalorder %s57, %s58
      %p72 = scmp.eq.s32.totalorder %s24, 1
      %p73 = por %p71, %p72
      %p75 = scmp.ne.s32.totalorder %s58, %s74
      %p76 = scmp.eq.s32.totalorder %s24, 0
      %p77 = por %p75, %p76
      %s78 = ssub.s32 %s18, %s25
      %p79 = scmp.eq.s32.totalorder %s78, 0
      %s81 = sadd.s32 %s80, 1
      %s82 = scalar_select %p79, %s80, %s81
      %p85 = pneg %p79
      %p86 = scmp.eq.s32.totalorder %s18, 1
      %p87 = por %p85, %p86
      %p88 = scmp.ne.s32.totalorder %s80, %s83
      %p89 = scmp.eq.s32.totalorder %s18, 0
      %p90 = por %p88, %p89
      %p91 = scmp.ne.s32.totalorder %s80, %s83
      %p92 = scmp.eq.s32.totalorder %s23, 1
      %p93 = por %p91, %p92
      %p94 = scmp.ne.s32.totalorder %s83, %s84
      %p95 = scmp.eq.s32.totalorder %s23, 0
      %p96 = por %p94, %p95
      %p97 = scmp.ne.s32.totalorder %s83, %s84
      %p98 = scmp.eq.s32.totalorder %s24, 1
      %p99 = por %p97, %p98
      %p101 = scmp.ne.s32.totalorder %s84, %s100
      %p102 = scmp.eq.s32.totalorder %s24, 0
      %p103 = por %p101, %p102
      %s104 = ssub.s32 %s18, %s25
      %p105 = scmp.eq.s32.totalorder %s104, 0
      %s107 = sadd.s32 %s106, 1
      %s108 = scalar_select %p105, %s106, %s107
      %p111 = pneg %p105
      %p112 = scmp.eq.s32.totalorder %s18, 1
      %p113 = por %p111, %p112
      %p114 = scmp.ne.s32.totalorder %s106, %s109
      %p115 = scmp.eq.s32.totalorder %s18, 0
      %p116 = por %p114, %p115
      %p117 = scmp.ne.s32.totalorder %s106, %s109
      %p118 = scmp.eq.s32.totalorder %s23, 1
      %p119 = por %p117, %p118
      %p120 = scmp.ne.s32.totalorder %s109, %s110
      %p121 = scmp.eq.s32.totalorder %s23, 0
      %p122 = por %p120, %p121
      %p123 = scmp.ne.s32.totalorder %s109, %s110
      %p124 = scmp.eq.s32.totalorder %s24, 1
      %p125 = por %p123, %p124
      %p127 = scmp.ne.s32.totalorder %s110, %s126
      %p128 = scmp.eq.s32.totalorder %s24, 0
      %p129 = por %p127, %p128
      %p130 = scmp.le.s32.totalorder 1, %s18
      %p131 = scmp.lt.s32.totalorder %s18, 3
      %p132 = pnand %p130, %p131
      %p133 = pneg %p132
      // Predicated region
      $region9: #{tpu_custom_call.1} parent=5 // pred_check
        _
      $region10: #{tpu_custom_call.1} parent=5 // pred_check_branch
        %135 = sbr.rel (%p132) target = $region12
      $region11: #{tpu_custom_call.1} parent=5 // pred_region
        %s136 = ssub.s32 %s18, 1
      $region12: #{tpu_custom_call.1} parent=5 // pred_fallthru
        _
      %p137 = scmp.lt.s32.totalorder %s18, 2
      // Predicated region
      $region13: #{tpu_custom_call.1} parent=5 // pred_check
        %p138 = pneg %p137
      $region14: #{tpu_custom_call.1} parent=5 // pred_check_branch
        %140 = sbr.rel (%p138) target = $region16
      $region15: #{tpu_custom_call.1} parent=5 // pred_region
        // Predicated region
        $region17: #{tpu_custom_call.1} parent=15 // pred_check
          %p141 = pneg %p38
        $region18: #{tpu_custom_call.1} parent=15 // pred_check_branch
          %143 = sbr.rel (%p141) target = $region20
        $region19: #{tpu_custom_call.1} parent=15 // pred_region
          %s144 = sand.u32 %s28, 1
          %s145 = scalar_lea.sflag [#allocation3], %s144
          %s146 = sand.u32 %s28, 1
          %s147 = scalar_lea.vmem [#allocation2], %s146
          %s149 = ssub.s32 16, 16
          %150 = vsyncadd %s145, %s149
          %s151 = smul.addr %s18, 16
          %s152 = scalar_lea.hbm %s0, %s151
          %s154 = sshll.u32 %s147, 4
          %s155 = int_to_ptr.vmem [resolvable:$true] %s154
          %157 = dma.hbm_to_vmem [thread:$0]  %s152, 16, %s155, %s145
        $region20: #{tpu_custom_call.1} parent=15 // pred_fallthru
          _
        // Predicated region
        $region21: #{tpu_custom_call.1} parent=15 // pred_check
          %p158 = pneg %p64
        $region22: #{tpu_custom_call.1} parent=15 // pred_check_branch
          %160 = sbr.rel (%p158) target = $region24
        $region23: #{tpu_custom_call.1} parent=15 // pred_region
          %p161 = scmp.lt.s32.totalorder %s18, 1
          %s162 = scalar_select %p161, %s18, 1
          %s163 = scalar_lea.vmem %s1, %s162
        $region24: #{tpu_custom_call.1} parent=15 // pred_fallthru
          _
        // Predicated region
        $region25: #{tpu_custom_call.1} parent=15 // pred_check
          %p164 = pneg %p90
        $region26: #{tpu_custom_call.1} parent=15 // pred_check_branch
          %166 = sbr.rel (%p164) target = $region28
        $region27: #{tpu_custom_call.1} parent=15 // pred_region
          %s167 = sand.u32 %s80, 1
          %s168 = scalar_lea.sflag [#allocation6], %s167
          %s169 = sand.u32 %s80, 1
          %s170 = smul.addr %s169, 128
          %s171 = scalar_lea.vmem [#allocation5], %s170
          %s173 = ssub.s32 2048, 2048
          %174 = vsyncadd %s168, %s173
          %s175 = smul.addr %s18, 16
          %s176 = smul.addr %s175, 128
          %s177 = scalar_lea.hbm %s2, %s176
          %s178 = sshll.u32 %s171, 4
          %s179 = int_to_ptr.vmem [resolvable:$true] %s178
          %184 = dma.hbm_to_vmem [thread:$0]  %s177, 2048, %s179, %s168, 128, 128, 8
        $region28: #{tpu_custom_call.1} parent=15 // pred_fallthru
          _
      $region16: #{tpu_custom_call.1} parent=5 // pred_fallthru
        _
      %p185 = scmp.le.s32.totalorder 1, %s18
      %p186 = scmp.lt.s32.totalorder %s18, 3
      %p187 = pnand %p185, %p186
      %p188 = pneg %p187
      // Predicated region
      $region29: #{tpu_custom_call.1} parent=5 // pred_check
        _
      $region30: #{tpu_custom_call.1} parent=5 // pred_check_branch
        %190 = sbr.rel (%p187) target = $region32
      $region31: #{tpu_custom_call.1} parent=5 // pred_region
        %s191 = ssub.s32 %s18, 1
        %s192 = sand.u32 %s31, 1
        %s193 = scalar_lea.sflag [#allocation3], %s192
        %s194 = sand.u32 %s31, 1
        %s195 = scalar_lea.vmem [#allocation2], %s194
        // Predicated region
        $region33: #{tpu_custom_call.1} parent=31 // pred_check
          %p196 = pneg %p44
        $region34: #{tpu_custom_call.1} parent=31 // pred_check_branch
          %198 = sbr.rel (%p196) target = $region36
        $region35: #{tpu_custom_call.1} parent=31 // pred_region
          %199 = dma.done %s193, 16
        $region36: #{tpu_custom_call.1} parent=31 // pred_fallthru
          _
        %s200 = sand.u32 %s83, 1
        %s201 = scalar_lea.sflag [#allocation6], %s200
        %s202 = sand.u32 %s83, 1
        %s203 = smul.addr %s202, 128
        %s204 = scalar_lea.vmem [#allocation5], %s203
        // Predicated region
        $region37: #{tpu_custom_call.1} parent=31 // pred_check
          %p205 = pneg %p96
        $region38: #{tpu_custom_call.1} parent=31 // pred_check_branch
          %207 = sbr.rel (%p205) target = $region40
        $region39: #{tpu_custom_call.1} parent=31 // pred_region
          %208 = dma.done %s201, 2048
        $region40: #{tpu_custom_call.1} parent=31 // pred_fallthru
          _
        %s209 = sand.u32 %s31, 1
        %s210 = scalar_lea.sflag [#allocation3], %s209
        %s211 = sand.u32 %s31, 1
        %s212 = scalar_lea.vmem [#allocation2], %s211
        %p213 = pneg %p44
        %p214 = pneg %p41
        %p215 = scmp.lt.s32.totalorder %s23, 1
        %s216 = scalar_select %p215, %s23, 1
        %s217 = scalar_lea.vmem %s1, %s216
        %p218 = pneg %p70
        %p219 = pneg %p67
        %s220 = sand.u32 %s83, 1
        %s221 = scalar_lea.sflag [#allocation6], %s220
        %s222 = sand.u32 %s83, 1
        %s223 = smul.addr %s222, 128
        %s224 = scalar_lea.vmem [#allocation5], %s223
        %p225 = pneg %p96
        %p226 = pneg %p93
        %p227 = pneg %p122
        %p228 = pneg %p119
        %s229 = sand.u32 %s109, 1
        %s230 = scalar_lea.sflag [#allocation4], %s229
        %s231 = sand.u32 %s109, 1
        %s232 = smul.addr %s231, 128
        %s233 = scalar_lea.vmem [#allocation7], %s232
        %p234 = scmp.lt.s32.totalorder %s23, 1
        %s235 = scalar_select %p234, %s23, 1
        %s236 = scalar_lea.vmem %s1, %s235
        %v237 = vld [vmem:[%s195] sm:$0x1]
        %v238 = vld [vmem:[%s236] sm:$0x1]
        %v239 = vld [vmem:[%s204] sm:$0xff]
        %v240 = vld [vmem:[%s204 + $0x8] sm:$0xff]
        %v241 = vld [vmem:[%s204 + $0x10] sm:$0xff]
        %v242 = vld [vmem:[%s204 + $0x18] sm:$0xff]
        %v243 = vld [vmem:[%s204 + $0x20] sm:$0xff]
        %v244 = vld [vmem:[%s204 + $0x28] sm:$0xff]
        %v245 = vld [vmem:[%s204 + $0x30] sm:$0xff]
        %v246 = vld [vmem:[%s204 + $0x38] sm:$0xff]
        %v247 = vld [vmem:[%s204 + $0x40] sm:$0xff]
        %v248 = vld [vmem:[%s204 + $0x48] sm:$0xff]
        %v249 = vld [vmem:[%s204 + $0x50] sm:$0xff]
        %v250 = vld [vmem:[%s204 + $0x58] sm:$0xff]
        %v251 = vld [vmem:[%s204 + $0x60] sm:$0xff]
        %v252 = vld [vmem:[%s204 + $0x68] sm:$0xff]
        %v253 = vld [vmem:[%s204 + $0x70] sm:$0xff]
        %v254 = vld [vmem:[%s204 + $0x78] sm:$0xff]
        %v255 = vlaneseq
        %v256 = vshrl.u32 %v255, 7
        %v257 = vsub.s32 0, %v256
        %v258 = vrot.slane %v237, %v257
        %260 = vbcast.lane.b32.xlu0 %v258, 256
        %v261 = vpop.permute.xlu0 %260
        %s263 = sor.u32 256, 8
        %264 = vbcast.lane.b32.xlu0 %v258, %s263
        %v265 = vpop.permute.xlu0 %264
        %s267 = sor.u32 256, 16
        %268 = vbcast.lane.b32.xlu0 %v258, %s267
        %v269 = vpop.permute.xlu0 %268
        %s271 = sor.u32 256, 24
        %272 = vbcast.lane.b32.xlu0 %v258, %s271
        %v273 = vpop.permute.xlu0 %272
        %s275 = sor.u32 256, 32
        %276 = vbcast.lane.b32.xlu0 %v258, %s275
        %v277 = vpop.permute.xlu0 %276
        %s279 = sor.u32 256, 40
        %280 = vbcast.lane.b32.xlu0 %v258, %s279
        %v281 = vpop.permute.xlu0 %280
        %s283 = sor.u32 256, 48
        %284 = vbcast.lane.b32.xlu0 %v258, %s283
        %v285 = vpop.permute.xlu0 %284
        %s287 = sor.u32 256, 56
        %288 = vbcast.lane.b32.xlu0 %v258, %s287
        %v289 = vpop.permute.xlu0 %288
        %s291 = sor.u32 256, 64
        %292 = vbcast.lane.b32.xlu0 %v258, %s291
        %v293 = vpop.permute.xlu0 %292
        %s295 = sor.u32 256, 72
        %296 = vbcast.lane.b32.xlu0 %v258, %s295
        %v297 = vpop.permute.xlu0 %296
        %s299 = sor.u32 256, 80
        %300 = vbcast.lane.b32.xlu0 %v258, %s299
        %v301 = vpop.permute.xlu0 %300
        %s303 = sor.u32 256, 88
        %304 = vbcast.lane.b32.xlu0 %v258, %s303
        %v305 = vpop.permute.xlu0 %304
        %s307 = sor.u32 256, 96
        %308 = vbcast.lane.b32.xlu0 %v258, %s307
        %v309 = vpop.permute.xlu0 %308
        %s311 = sor.u32 256, 104
        %312 = vbcast.lane.b32.xlu0 %v258, %s311
        %v313 = vpop.permute.xlu0 %312
        %s315 = sor.u32 256, 112
        %316 = vbcast.lane.b32.xlu0 %v258, %s315
        %v317 = vpop.permute.xlu0 %316
        %s319 = sor.u32 256, 120
        %320 = vbcast.lane.b32.xlu0 %v258, %s319
        %v321 = vpop.permute.xlu0 %320
        %v322 = vsub.f32 1.0, %v261
        %v323 = vsub.f32 1.0, %v265
        %v324 = vsub.f32 1.0, %v269
        %v325 = vsub.f32 1.0, %v273
        %v326 = vsub.f32 1.0, %v277
        %v327 = vsub.f32 1.0, %v281
        %v328 = vsub.f32 1.0, %v285
        %v329 = vsub.f32 1.0, %v289
        %v330 = vsub.f32 1.0, %v293
        %v331 = vsub.f32 1.0, %v297
        %v332 = vsub.f32 1.0, %v301
        %v333 = vsub.f32 1.0, %v305
        %v334 = vsub.f32 1.0, %v309
        %v335 = vsub.f32 1.0, %v313
        %v336 = vsub.f32 1.0, %v317
        %v337 = vsub.f32 1.0, %v321
        %v339 = vlaneseq
        %v340 = vshrl.u32 %v339, 7
        %v341 = vsub.s32 0, %v340
        %v342 = vrot.slane %v237, %v341
        %v344 = vsub.f32 %v322, %v342
        %v345 = vsub.f32 %v323, %v342
        %v346 = vsub.f32 %v324, %v342
        %v347 = vsub.f32 %v325, %v342
        %v348 = vsub.f32 %v326, %v342
        %v349 = vsub.f32 %v327, %v342
        %v350 = vsub.f32 %v328, %v342
        %v351 = vsub.f32 %v329, %v342
        %v352 = vsub.f32 %v330, %v342
        %v353 = vsub.f32 %v331, %v342
        %v354 = vsub.f32 %v332, %v342
        %v355 = vsub.f32 %v333, %v342
        %v356 = vsub.f32 %v334, %v342
        %v357 = vsub.f32 %v335, %v342
        %v358 = vsub.f32 %v336, %v342
        %v359 = vsub.f32 %v337, %v342
        %v360 = vmul.f32 %v344, %v239
        %v361 = vmul.f32 %v345, %v240
        %v362 = vmul.f32 %v346, %v241
        %v363 = vmul.f32 %v347, %v242
        %v364 = vmul.f32 %v348, %v243
        %v365 = vmul.f32 %v349, %v244
        %v366 = vmul.f32 %v350, %v245
        %v367 = vmul.f32 %v351, %v246
        %v368 = vmul.f32 %v352, %v247
        %v369 = vmul.f32 %v353, %v248
        %v370 = vmul.f32 %v354, %v249
        %v371 = vmul.f32 %v355, %v250
        %v372 = vmul.f32 %v356, %v251
        %v373 = vmul.f32 %v357, %v252
        %v374 = vmul.f32 %v358, %v253
        %v375 = vmul.f32 %v359, %v254
        %v377 = vlaneseq
        %v378 = vshrl.u32 %v377, 7
        %v379 = vsub.s32 0, %v378
        %v380 = vrot.slane %v238, %v379
        %v382 = vmul.f32 %v261, %v380
        %v383 = vmul.f32 %v265, %v380
        %v384 = vmul.f32 %v269, %v380
        %v385 = vmul.f32 %v273, %v380
        %v386 = vmul.f32 %v277, %v380
        %v387 = vmul.f32 %v281, %v380
        %v388 = vmul.f32 %v285, %v380
        %v389 = vmul.f32 %v289, %v380
        %v390 = vmul.f32 %v293, %v380
        %v391 = vmul.f32 %v297, %v380
        %v392 = vmul.f32 %v301, %v380
        %v393 = vmul.f32 %v305, %v380
        %v394 = vmul.f32 %v309, %v380
        %v395 = vmul.f32 %v313, %v380
        %v396 = vmul.f32 %v317, %v380
        %v397 = vmul.f32 %v321, %v380
        %v398 = vadd.f32 %v360, %v382
        %v399 = vadd.f32 %v361, %v383
        %v400 = vadd.f32 %v362, %v384
        %v401 = vadd.f32 %v363, %v385
        %v402 = vadd.f32 %v364, %v386
        %v403 = vadd.f32 %v365, %v387
        %v404 = vadd.f32 %v366, %v388
        %v405 = vadd.f32 %v367, %v389
        %v406 = vadd.f32 %v368, %v390
        %v407 = vadd.f32 %v369, %v391
        %v408 = vadd.f32 %v370, %v392
        %v409 = vadd.f32 %v371, %v393
        %v410 = vadd.f32 %v372, %v394
        %v411 = vadd.f32 %v373, %v395
        %v412 = vadd.f32 %v374, %v396
        %v413 = vadd.f32 %v375, %v397
        %414 = vst [vmem:[%s233] sm:$0xff] %v398
        %415 = vst [vmem:[%s233 + $0x8] sm:$0xff] %v399
        %416 = vst [vmem:[%s233 + $0x10] sm:$0xff] %v400
        %417 = vst [vmem:[%s233 + $0x18] sm:$0xff] %v401
        %418 = vst [vmem:[%s233 + $0x20] sm:$0xff] %v402
        %419 = vst [vmem:[%s233 + $0x28] sm:$0xff] %v403
        %420 = vst [vmem:[%s233 + $0x30] sm:$0xff] %v404
        %421 = vst [vmem:[%s233 + $0x38] sm:$0xff] %v405
        %422 = vst [vmem:[%s233 + $0x40] sm:$0xff] %v406
        %423 = vst [vmem:[%s233 + $0x48] sm:$0xff] %v407
        %424 = vst [vmem:[%s233 + $0x50] sm:$0xff] %v408
        %425 = vst [vmem:[%s233 + $0x58] sm:$0xff] %v409
        %426 = vst [vmem:[%s233 + $0x60] sm:$0xff] %v410
        %427 = vst [vmem:[%s233 + $0x68] sm:$0xff] %v411
        %428 = vst [vmem:[%s233 + $0x70] sm:$0xff] %v412
        %429 = vst [vmem:[%s233 + $0x78] sm:$0xff] %v413
        %s430 = sand.u32 %s109, 1
        %s431 = scalar_lea.sflag [#allocation4], %s430
        %s432 = sand.u32 %s109, 1
        %s433 = smul.addr %s432, 128
        %s434 = scalar_lea.vmem [#allocation7], %s433
        // Predicated region
        $region41: #{tpu_custom_call.1} parent=31 // pred_check
          %p435 = pneg %p119
        $region42: #{tpu_custom_call.1} parent=31 // pred_check_branch
          %437 = sbr.rel (%p435) target = $region44
        $region43: #{tpu_custom_call.1} parent=31 // pred_region
          %s439 = ssub.s32 2048, 2048
          %440 = vsyncadd %s431, %s439
          %s441 = smul.addr %s23, 16
          %s442 = smul.addr %s441, 128
          %s443 = scalar_lea.hbm %s3, %s442
          %s444 = sshll.u32 %s434, 4
          %s445 = int_to_ptr.vmem [resolvable:$true] %s444
          %450 = dma.vmem_to_hbm [thread:$0]  %s445, 2048, %s443, %s431, 128, 128, 8
        $region44: #{tpu_custom_call.1} parent=31 // pred_fallthru
          _
      $region32: #{tpu_custom_call.1} parent=5 // pred_fallthru
        _
      %p451 = scmp.le.s32.totalorder 2, %s18
      // Predicated region
      $region45: #{tpu_custom_call.1} parent=5 // pred_check
        %p452 = pneg %p451
      $region46: #{tpu_custom_call.1} parent=5 // pred_check_branch
        %454 = sbr.rel (%p452) target = $region48
      $region47: #{tpu_custom_call.1} parent=5 // pred_region
        %s455 = ssub.s32 %s18, 2
        // Predicated region
        $region49: #{tpu_custom_call.1} parent=47 // pred_check
          %p456 = pneg %p125
        $region50: #{tpu_custom_call.1} parent=47 // pred_check_branch
          %458 = sbr.rel (%p456) target = $region52
        $region51: #{tpu_custom_call.1} parent=47 // pred_region
          %s459 = sand.u32 %s110, 1
          %s460 = scalar_lea.sflag [#allocation4], %s459
          %s461 = sand.u32 %s110, 1
          %s462 = smul.addr %s461, 128
          %s463 = scalar_lea.vmem [#allocation7], %s462
          %464 = dma.done %s460, 2048
        $region52: #{tpu_custom_call.1} parent=47 // pred_fallthru
          _
      $region48: #{tpu_custom_call.1} parent=5 // pred_fallthru
        _
    $region6: #{tpu_custom_call.1} parent=1 // loop_footer
      %s22 = sadd.s32 1, %s18
    $region7: #{tpu_custom_call.1} parent=1 // loop_footer_branch
      %17 = sbr.rel target = $region3
    $region8: #{tpu_custom_call.1} parent=1 // loop_exit
      _
    %465 = vsyncpa [#allocation3], 1
    %s466 = scalar_lea.sflag [#allocation3], 1
    %467 = vsyncpa %s466, 1
    %468 = vsyncpa [#allocation6], 1
    %s469 = scalar_lea.sflag [#allocation6], 1
    %470 = vsyncpa %s469, 1
    %471 = vsyncpa [#allocation4], 1
    %s472 = scalar_lea.sflag [#allocation4], 1
    %473 = vsyncpa %s472, 1

</llo_original>
